<compile_context>
chip_gen: v5e
topology: v5e:2x2
jax: 0.10.0
libtpu: 0.0.40
codegen_flags: <defaults>
</compile_context>

<pallas_src>
import functools

import jax
import jax.numpy as jnp
from jax.experimental import pallas as pl
from jax.experimental.pallas import tpu as pltpu

LANE = 128
NODE_TILE = 256
_BN_EPS = 1e-5
_VMEM_LIMIT = 64 * 1024 * 1024

_VMEM = pl.BlockSpec(memory_space=pltpu.MemorySpace.VMEM)


def _round_up(x, m):
    return (x + m - 1) // m * m


# ----------------------------- Pallas kernels -----------------------------

def _gin_mlp_kernel(agg_ref, w1_ref, b1_ref, w2_ref, b2_ref,
                    z_ref, sum_ref, sq_ref, *, n_real, tile_n):
    """Fused GIN MLP (Linear->ReLU->Linear->outer ReLU) + masked BN-stat accumulation."""
    i = pl.program_id(0)

    @pl.when(i == 0)
    def _():
        sum_ref[...] = jnp.zeros_like(sum_ref)
        sq_ref[...] = jnp.zeros_like(sq_ref)

    h = jnp.dot(agg_ref[...].astype(jnp.bfloat16), w1_ref[...],
                preferred_element_type=jnp.float32)
    h = jnp.maximum(h + b1_ref[...], 0.0)
    z = jnp.dot(h.astype(jnp.bfloat16), w2_ref[...],
                preferred_element_type=jnp.float32)
    z = jnp.maximum(z + b2_ref[...], 0.0)          # outer F.relu of the encoder

    # Mask zero-padded node rows so BatchNorm stats only see real nodes.
    row = i * tile_n + jax.lax.broadcasted_iota(jnp.int32, (tile_n, 1), 0)
    z = z * (row < n_real).astype(jnp.float32)

    z_ref[...] = z
    sum_ref[...] += jnp.sum(z, axis=0, keepdims=True)
    sq_ref[...] += jnp.sum(z * z, axis=0, keepdims=True)


def gin_mlp_layer(agg, w1, b1, w2, b2, *, n_real, tile_n):
    n_pad, d_in = agg.shape
    h_pad = w1.shape[1]
    grid = (n_pad // tile_n,)
    flops = 2 * n_pad * d_in * h_pad + 2 * n_pad * h_pad * h_pad
    bytes_accessed = 4 * n_pad * (d_in + 2 * h_pad) + 2 * (d_in + h_pad) * h_pad
    return pl.pallas_call(
        functools.partial(_gin_mlp_kernel, n_real=n_real, tile_n=tile_n),
        grid=grid,
        in_specs=[
            pl.BlockSpec((tile_n, d_in), lambda i: (i, 0)),
            pl.BlockSpec((d_in, h_pad), lambda i: (0, 0)),
            pl.BlockSpec((1, h_pad), lambda i: (0, 0)),
            pl.BlockSpec((h_pad, h_pad), lambda i: (0, 0)),
            pl.BlockSpec((1, h_pad), lambda i: (0, 0)),
        ],
        out_specs=[
            pl.BlockSpec((tile_n, h_pad), lambda i: (i, 0)),
            pl.BlockSpec((1, h_pad), lambda i: (0, 0)),     # BN sum accumulator
            pl.BlockSpec((1, h_pad), lambda i: (0, 0)),     # BN sumsq accumulator
        ],
        out_shape=[
            jax.ShapeDtypeStruct((n_pad, h_pad), jnp.float32),
            jax.ShapeDtypeStruct((1, h_pad), jnp.float32),
            jax.ShapeDtypeStruct((1, h_pad), jnp.float32),
        ],
        compiler_params=pltpu.CompilerParams(
            dimension_semantics=("arbitrary",),
            vmem_limit_bytes=_VMEM_LIMIT),
        cost_estimate=pl.CostEstimate(
            flops=flops, transcendentals=0, bytes_accessed=bytes_accessed),
    )(agg, w1, b1, w2, b2)


def _bn_pool_kernel(z_ref, sum_ref, sq_ref, gamma_ref, beta_ref, pool_ref,
                    h_ref, pooled_ref, *, n_real, tile_n, eps):
    """Train-mode BatchNorm1d (biased batch variance) + fused global_add_pool."""
    i = pl.program_id(0)

    @pl.when(i == 0)
    def _():
        pooled_ref[...] = jnp.zeros_like(pooled_ref)

    inv_n = 1.0 / n_real
    mean = sum_ref[...] * inv_n
    var = jnp.maximum(sq_ref[...] * inv_n - mean * mean, 0.0)
    scale = gamma_ref[...] * jax.lax.rsqrt(var + eps)
    shift = beta_ref[...] - mean * scale

    h = z_ref[...] * scale + shift
    row = i * tile_n + jax.lax.broadcasted_iota(jnp.int32, (tile_n, 1), 0)
    h = h * (row < n_real).astype(jnp.float32)      # keep padded node rows exactly zero

    h_ref[...] = h
    pooled_ref[...] += jnp.dot(pool_ref[...], h.astype(jnp.bfloat16),
                               preferred_element_type=jnp.float32)


def bn_pool_layer(z, stat_sum, stat_sq, gamma, beta, pool, *,
                  n_real, tile_n, eps=_BN_EPS):
    n_pad, h_pad = z.shape
    g_pad = pool.shape[0]
    grid = (n_pad // tile_n,)
    flops = 2 * g_pad * n_pad * h_pad + 4 * n_pad * h_pad
    bytes_accessed = 8 * n_pad * h_pad + 2 * g_pad * n_pad + 4 * g_pad * h_pad
    return pl.pallas_call(
        functools.partial(_bn_pool_kernel, n_real=n_real, tile_n=tile_n, eps=eps),
        grid=grid,
        in_specs=[
            pl.BlockSpec((tile_n, h_pad), lambda i: (i, 0)),
            pl.BlockSpec((1, h_pad), lambda i: (0, 0)),
            pl.BlockSpec((1, h_pad), lambda i: (0, 0)),
            pl.BlockSpec((1, h_pad), lambda i: (0, 0)),
            pl.BlockSpec((1, h_pad), lambda i: (0, 0)),
            pl.BlockSpec((g_pad, tile_n), lambda i: (0, i)),
        ],
        out_specs=[
            pl.BlockSpec((tile_n, h_pad), lambda i: (i, 0)),
            pl.BlockSpec((g_pad, h_pad), lambda i: (0, 0)),   # pooled accumulator
        ],
        out_shape=[
            jax.ShapeDtypeStruct((n_pad, h_pad), jnp.float32),
            jax.ShapeDtypeStruct((g_pad, h_pad), jnp.float32),
        ],
        compiler_params=pltpu.CompilerParams(
            dimension_semantics=("arbitrary",),
            vmem_limit_bytes=_VMEM_LIMIT),
        cost_estimate=pl.CostEstimate(
            flops=flops, transcendentals=0, bytes_accessed=bytes_accessed),
    )(z, stat_sum, stat_sq, gamma, beta, pool)


def _proj_kernel(y_ref, w1_ref, b1_ref, w2_ref, b2_ref, o_ref):
    y = jnp.dot(y_ref[...].astype(jnp.bfloat16), w1_ref[...],
                preferred_element_type=jnp.float32)
    y = jnp.maximum(y + b1_ref[...], 0.0)
    y = jnp.dot(y.astype(jnp.bfloat16), w2_ref[...],
                preferred_element_type=jnp.float32)
    o_ref[...] = (y + b2_ref[...]).astype(o_ref.dtype)


def proj_head(y, w1, b1, w2, b2):
    # [num_graphs_pad, emb_pad] is tiny -> whole-array VMEM, single fused kernel.
    g_pad, e_pad = y.shape
    return pl.pallas_call(
        _proj_kernel,
        out_shape=jax.ShapeDtypeStruct((g_pad, e_pad), jnp.float32),
        in_specs=[_VMEM] * 5,
        out_specs=_VMEM,
        compiler_params=pltpu.CompilerParams(vmem_limit_bytes=_VMEM_LIMIT),
    )(y, w1, b1, w2, b2)


# ----------------------------- parameter setup -----------------------------

def xavier_uniform(key, shape):
    fan_in, fan_out = shape
    bound = (6.0 / (fan_in + fan_out)) ** 0.5
    return jax.random.uniform(key, shape, jnp.float32, -bound, bound)


def _pad_mat(w, rows, cols, dtype=jnp.bfloat16):
    out = jnp.zeros((rows, cols), jnp.float32).at[:w.shape[0], :w.shape[1]].set(w)
    return out.astype(dtype)


def _pad_row(v, cols):
    return jnp.zeros((1, cols), jnp.float32).at[0, :v.shape[0]].set(v)


def init_params(key, num_features, hidden_dim, num_gc_layers):
    feat_pad = _round_up(num_features, LANE)
    h_pad = _round_up(hidden_dim, LANE)
    emb = hidden_dim * num_gc_layers
    emb_pad = _round_up(emb, LANE)

    params = {"gin": [], "bn": []}
    for i in range(num_gc_layers):
        in_dim = num_features if i == 0 else hidden_dim
        in_pad = feat_pad if i == 0 else h_pad
        key, k1, k2 = jax.random.split(key, 3)
        params["gin"].append({
            "w1": _pad_mat(xavier_uniform(k1, (in_dim, hidden_dim)), in_pad, h_pad),
            "b1": _pad_row(jnp.zeros((hidden_dim,), jnp.float32), h_pad),
            "w2": _pad_mat(xavier_uniform(k2, (hidden_dim, hidden_dim)), h_pad, h_pad),
            "b2": _pad_row(jnp.zeros((hidden_dim,), jnp.float32), h_pad),
        })
        params["bn"].append({
            "gamma": _pad_row(jnp.ones((hidden_dim,), jnp.float32), h_pad),
            "beta": _pad_row(jnp.zeros((hidden_dim,), jnp.float32), h_pad),
        })
    key, k3, k4 = jax.random.split(key, 3)
    params["proj"] = {
        "w1": _pad_mat(xavier_uniform(k3, (emb, emb)), emb_pad, emb_pad),
        "b1": _pad_row(jnp.zeros((emb,), jnp.float32), emb_pad),
        "w2": _pad_mat(xavier_uniform(k4, (emb, emb)), emb_pad, emb_pad),
        "b2": _pad_row(jnp.zeros((emb,), jnp.float32), emb_pad),
    }
    return params


# ------------------------------- forward pass ------------------------------

def simclr_forward(params, x, edge_index, batch, num_graphs,
                   hidden_dim, num_gc_layers):
    n_real, num_features = x.shape
    feat_pad = _round_up(num_features, LANE)
    tile_n = min(NODE_TILE, _round_up(n_real, LANE))
    n_pad = _round_up(n_real, tile_n)
    g_pad = _round_up(num_graphs, 8)

    src, dst = edge_index[0], edge_index[1]

    # zero-padded node features [n_pad, feat_pad]
    h = jnp.zeros((n_pad, feat_pad), jnp.float32).at[:n_real, :num_features].set(x)

    # global_add_pool as a 0/1 (exact in bf16) segment matrix [g_pad, n_pad]
    onehot = (batch[None, :] == jnp.arange(g_pad, dtype=batch.dtype)[:, None])
    pool = jnp.zeros((g_pad, n_pad), jnp.bfloat16).at[:, :n_real].set(
        onehot.astype(jnp.bfloat16))

    pooled_cols = []
    for gin_p, bn_p in zip(params["gin"], params["bn"]):
        # GINConv (eps=0): agg_i = h_i + sum_{j -> i} h_j  (sparse, O(E*D))
        agg = h + jax.ops.segment_sum(h[src], dst, num_segments=n_pad)
        z, s_sum, s_sq = gin_mlp_layer(agg, gin_p["w1"], gin_p["b1"],
                                       gin_p["w2"], gin_p["b2"],
                                       n_real=n_real, tile_n=tile_n)
        h, pooled = bn_pool_layer(z, s_sum, s_sq, bn_p["gamma"], bn_p["beta"],
                                  pool, n_real=n_real, tile_n=tile_n)
        pooled_cols.append(pooled[:, :hidden_dim])

    emb = hidden_dim * num_gc_layers
    emb_pad = _round_up(emb, LANE)
    y = jnp.concatenate(pooled_cols, axis=1)                       # [g_pad, emb]
    y = jnp.zeros((g_pad, emb_pad), jnp.float32).at[:, :emb].set(y)

    # proj_head: Linear -> ReLU -> Linear (fused)
    y = proj_head(y, params["proj"]["w1"], params["proj"]["b1"],
                  params["proj"]["w2"], params["proj"]["b2"])
    return y[:num_graphs, :emb]


if __name__ == "__main__":
    key = jax.random.PRNGKey(0)
    num_nodes, num_features = 16, 4
    hidden_dim, num_gc_layers = 32, 2
    num_graphs = 2

    kx, ke1, ke2, kp = jax.random.split(key, 4)
    x = jax.random.normal(kx, (num_nodes, num_features), jnp.float32)
    src = jax.random.randint(ke1, (40,), 0, num_nodes)
    dst = jax.random.randint(ke2, (40,), 0, num_nodes)
    # undirected edge list, shape [2, E]
    edge_index = jnp.stack([jnp.concatenate([src, dst]),
                            jnp.concatenate([dst, src])]).astype(jnp.int32)
    batch = jnp.concatenate([jnp.zeros(8, jnp.int32), jnp.ones(8, jnp.int32)])

    params = init_params(kp, num_features, hidden_dim, num_gc_layers)

    y = simclr_forward(params, x, edge_index, batch, num_graphs,
                       hidden_dim, num_gc_layers)
    y = jax.block_until_ready(y)
    assert y.shape == (num_graphs, hidden_dim * num_gc_layers), y.shape
    assert jnp.all(jnp.isfinite(y))
    print("KERNEL_OK")
</pallas_src>

<mosaic_0001>
module attributes {stable_mosaic.version = 11 : i64} {
  func.func @_gin_mlp_kernel(%arg0: i32, %arg1: memref<128x128xf32, #tpu.memory_space<vmem>>, %arg2: memref<128x128xbf16, #tpu.memory_space<vmem>>, %arg3: memref<1x128xf32, #tpu.memory_space<vmem>>, %arg4: memref<128x128xbf16, #tpu.memory_space<vmem>>, %arg5: memref<1x128xf32, #tpu.memory_space<vmem>>, %arg6: memref<128x128xf32, #tpu.memory_space<vmem>>, %arg7: memref<1x128xf32, #tpu.memory_space<vmem>>, %arg8: memref<1x128xf32, #tpu.memory_space<vmem>>) attributes {dimension_semantics = [#tpu.dimension_semantics<arbitrary>], iteration_bounds = array<i64: 1>, scalar_prefetch = 0 : i64, scratch_operands = 0 : i64, tpu.core_type = #tpu.core_type<tc>, window_params = [{transform_indices = @transform_0, window_bounds = array<i64: 128, 128>}, {pipeline_mode = #tpu.pipeline_mode<synchronous>, transform_indices = @transform_1, window_bounds = array<i64: 128, 128>}, {pipeline_mode = #tpu.pipeline_mode<synchronous>, transform_indices = @transform_2, window_bounds = array<i64: 1, 128>}, {pipeline_mode = #tpu.pipeline_mode<synchronous>, transform_indices = @transform_3, window_bounds = array<i64: 128, 128>}, {pipeline_mode = #tpu.pipeline_mode<synchronous>, transform_indices = @transform_4, window_bounds = array<i64: 1, 128>}, {transform_indices = @transform_5, window_bounds = array<i64: 128, 128>}, {pipeline_mode = #tpu.pipeline_mode<synchronous>, transform_indices = @transform_6, window_bounds = array<i64: 1, 128>}, {pipeline_mode = #tpu.pipeline_mode<synchronous>, transform_indices = @transform_7, window_bounds = array<i64: 1, 128>}]} {
    %c0_i32 = arith.constant 0 : i32
    %0 = arith.cmpi eq, %arg0, %c0_i32 : i32
    %1 = arith.extui %0 : i1 to i32
    %c0_i32_0 = arith.constant 0 : i32
    %2 = arith.cmpi ne, %1, %c0_i32_0 : i32
    scf.if %2 {
      %cst_25 = arith.constant 0.000000e+00 : f32
      %42 = vector.broadcast %cst_25 : f32 to vector<1x128xf32>
      %c0_26 = arith.constant 0 : index
      %c0_27 = arith.constant 0 : index
      %43 = vector.load %arg7[%c0_26, %c0_27] : memref<1x128xf32, #tpu.memory_space<vmem>>, vector<1x128xf32>
      tpu.vector_store %arg7[%c0_26, %c0_27], %42 {strides = array<i32>} : memref<1x128xf32, #tpu.memory_space<vmem>>, vector<1x128xf32>,
      %cst_28 = arith.constant 0.000000e+00 : f32
      %44 = vector.broadcast %cst_28 : f32 to vector<1x128xf32>
      %c0_29 = arith.constant 0 : index
      %c0_30 = arith.constant 0 : index
      %45 = vector.load %arg8[%c0_29, %c0_30] : memref<1x128xf32, #tpu.memory_space<vmem>>, vector<1x128xf32>
      tpu.vector_store %arg8[%c0_29, %c0_30], %44 {strides = array<i32>} : memref<1x128xf32, #tpu.memory_space<vmem>>, vector<1x128xf32>,
    } else {
    }
    %c0 = arith.constant 0 : index
    %c0_1 = arith.constant 0 : index
    %3 = vector.load %arg1[%c0, %c0_1] : memref<128x128xf32, #tpu.memory_space<vmem>>, vector<128x128xf32>
    %4 = arith.truncf %3 : vector<128x128xf32> to vector<128x128xbf16>
    %c0_2 = arith.constant 0 : index
    %c0_3 = arith.constant 0 : index
    %5 = vector.load %arg2[%c0_2, %c0_3] : memref<128x128xbf16, #tpu.memory_space<vmem>>, vector<128x128xbf16>
    %cst = arith.constant dense<0.000000e+00> : vector<128x128xf32>
    %6 = tpu.matmul %4, %5, %cst {dimension_numbers = #tpu.dot_dimension_numbers<[1], [0], [0], [1], [0, 0, 1, 1], [], []>} : vector<128x128xbf16>, vector<128x128xbf16>, vector<128x128xf32> -> vector<128x128xf32>
    %c0_4 = arith.constant 0 : index
    %c0_5 = arith.constant 0 : index
    %7 = vector.load %arg3[%c0_4, %c0_5] : memref<1x128xf32, #tpu.memory_space<vmem>>, vector<1x128xf32>
    %8 = vector.broadcast %7 : vector<1x128xf32> to vector<128x128xf32>
    %9 = arith.addf %6, %8 : vector<128x128xf32>
    %cst_6 = arith.constant 0.000000e+00 : f32
    %10 = vector.broadcast %cst_6 : f32 to vector<128x128xf32>
    %11 = arith.maximumf %9, %10 : vector<128x128xf32>
    %12 = arith.truncf %11 : vector<128x128xf32> to vector<128x128xbf16>
    %c0_7 = arith.constant 0 : index
    %c0_8 = arith.constant 0 : index
    %13 = vector.load %arg4[%c0_7, %c0_8] : memref<128x128xbf16, #tpu.memory_space<vmem>>, vector<128x128xbf16>
    %cst_9 = arith.constant dense<0.000000e+00> : vector<128x128xf32>
    %14 = tpu.matmul %12, %13, %cst_9 {dimension_numbers = #tpu.dot_dimension_numbers<[1], [0], [0], [1], [0, 0, 1, 1], [], []>} : vector<128x128xbf16>, vector<128x128xbf16>, vector<128x128xf32> -> vector<128x128xf32>
    %c0_10 = arith.constant 0 : index
    %c0_11 = arith.constant 0 : index
    %15 = vector.load %arg5[%c0_10, %c0_11] : memref<1x128xf32, #tpu.memory_space<vmem>>, vector<1x128xf32>
    %16 = vector.broadcast %15 : vector<1x128xf32> to vector<128x128xf32>
    %17 = arith.addf %14, %16 : vector<128x128xf32>
    %cst_12 = arith.constant 0.000000e+00 : f32
    %18 = vector.broadcast %cst_12 : f32 to vector<128x128xf32>
    %19 = arith.maximumf %17, %18 : vector<128x128xf32>
    %c128_i32 = arith.constant 128 : i32
    %20 = arith.muli %arg0, %c128_i32 : i32
    %21 = tpu.iota {dimensions = array<i32: 0>} : vector<128x1xi32>
    %22 = vector.broadcast %20 : i32 to vector<128x1xi32>
    %23 = arith.addi %22, %21 : vector<128x1xi32>
    %c16_i32 = arith.constant 16 : i32
    %24 = vector.broadcast %c16_i32 : i32 to vector<128x1xi32>
    %25 = arith.cmpi slt, %23, %24 : vector<128x1xi32>
    %26 = arith.extui %25 : vector<128x1xi1> to vector<128x1xi32>
    %27 = arith.sitofp %26 : vector<128x1xi32> to vector<128x1xf32>
    %28 = vector.broadcast %27 : vector<128x1xf32> to vector<128x128xf32>
    %29 = arith.mulf %19, %28 : vector<128x128xf32>
    %c0_13 = arith.constant 0 : index
    %c0_14 = arith.constant 0 : index
    %30 = vector.load %arg6[%c0_13, %c0_14] : memref<128x128xf32, #tpu.memory_space<vmem>>, vector<128x128xf32>
    tpu.vector_store %arg6[%c0_13, %c0_14], %29 {strides = array<i32>} : memref<128x128xf32, #tpu.memory_space<vmem>>, vector<128x128xf32>,
    %c0_15 = arith.constant 0 : index
    %c0_16 = arith.constant 0 : index
    %31 = vector.load %arg7[%c0_15, %c0_16] : memref<1x128xf32, #tpu.memory_space<vmem>>, vector<1x128xf32>
    %cst_17 = arith.constant dense<0.000000e+00> : vector<128xf32>
    %32 = vector.multi_reduction <add>, %29, %cst_17 [0] : vector<128x128xf32> to vector<128xf32>
    %33 = vector.shape_cast %32 : vector<128xf32> to vector<1x128xf32>
    %34 = arith.addf %31, %33 : vector<1x128xf32>
    %c0_18 = arith.constant 0 : index
    %c0_19 = arith.constant 0 : index
    %35 = vector.load %arg7[%c0_18, %c0_19] : memref<1x128xf32, #tpu.memory_space<vmem>>, vector<1x128xf32>
    tpu.vector_store %arg7[%c0_18, %c0_19], %34 {strides = array<i32>} : memref<1x128xf32, #tpu.memory_space<vmem>>, vector<1x128xf32>,
    %c0_20 = arith.constant 0 : index
    %c0_21 = arith.constant 0 : index
    %36 = vector.load %arg8[%c0_20, %c0_21] : memref<1x128xf32, #tpu.memory_space<vmem>>, vector<1x128xf32>
    %37 = arith.mulf %29, %29 : vector<128x128xf32>
    %cst_22 = arith.constant dense<0.000000e+00> : vector<128xf32>
    %38 = vector.multi_reduction <add>, %37, %cst_22 [0] : vector<128x128xf32> to vector<128xf32>
    %39 = vector.shape_cast %38 : vector<128xf32> to vector<1x128xf32>
    %40 = arith.addf %36, %39 : vector<1x128xf32>
    %c0_23 = arith.constant 0 : index
    %c0_24 = arith.constant 0 : index
    %41 = vector.load %arg8[%c0_23, %c0_24] : memref<1x128xf32, #tpu.memory_space<vmem>>, vector<1x128xf32>
    tpu.vector_store %arg8[%c0_23, %c0_24], %40 {strides = array<i32>} : memref<1x128xf32, #tpu.memory_space<vmem>>, vector<1x128xf32>,
    return
  }
  func.func @transform_0(%arg0: i32) -> (i32, i32) {
    %c0_i32 = arith.constant 0 : i32
    %c0_i32_0 = arith.constant 0 : i32
    return %arg0, %c0_i32 : i32, i32
  }
  func.func @transform_1(%arg0: i32) -> (i32, i32) {
    %c0_i32 = arith.constant 0 : i32
    %c0_i32_0 = arith.constant 0 : i32
    %c0_i32_1 = arith.constant 0 : i32
    return %c0_i32, %c0_i32_0 : i32, i32
  }
  func.func @transform_2(%arg0: i32) -> (i32, i32) {
    %c0_i32 = arith.constant 0 : i32
    %c0_i32_0 = arith.constant 0 : i32
    %c0_i32_1 = arith.constant 0 : i32
    return %c0_i32, %c0_i32_0 : i32, i32
  }
  func.func @transform_3(%arg0: i32) -> (i32, i32) {
    %c0_i32 = arith.constant 0 : i32
    %c0_i32_0 = arith.constant 0 : i32
    %c0_i32_1 = arith.constant 0 : i32
    return %c0_i32, %c0_i32_0 : i32, i32
  }
  func.func @transform_4(%arg0: i32) -> (i32, i32) {
    %c0_i32 = arith.constant 0 : i32
    %c0_i32_0 = arith.constant 0 : i32
    %c0_i32_1 = arith.constant 0 : i32
    return %c0_i32, %c0_i32_0 : i32, i32
  }
  func.func @transform_5(%arg0: i32) -> (i32, i32) {
    %c0_i32 = arith.constant 0 : i32
    %c0_i32_0 = arith.constant 0 : i32
    return %arg0, %c0_i32 : i32, i32
  }
  func.func @transform_6(%arg0: i32) -> (i32, i32) {
    %c0_i32 = arith.constant 0 : i32
    %c0_i32_0 = arith.constant 0 : i32
    %c0_i32_1 = arith.constant 0 : i32
    return %c0_i32, %c0_i32_0 : i32, i32
  }
  func.func @transform_7(%arg0: i32) -> (i32, i32) {
    %c0_i32 = arith.constant 0 : i32
    %c0_i32_0 = arith.constant 0 : i32
    %c0_i32_1 = arith.constant 0 : i32
    return %c0_i32, %c0_i32_0 : i32, i32
  }
}

</mosaic_0001>

<llo_original>
// kernel: tpu_custom_call.1
$region0: #{tpu_custom_call.1}
  #allocation0 [shape = 'u32[]', space=smem, size = 0x4, offset = 0x4, fixed_abs, tag = 'smem constant byte address 0x4 - core index']
  #allocation1 [shape = 'u32[72,128]{1,0:T(1,128)}', space=vmem, size = 0x9000, scoped, tag = 'internal scratch']
  %s0 = inlined_call_operand.hbm [shape: f32[128,128], index: 0, kind: input, shape index: {}]
  %s1 = inlined_call_operand.hbm [shape: bf16[128,128], index: 1, kind: input, shape index: {}]
  %s2 = inlined_call_operand.vmem [shape: f32[1,128], index: 2, kind: input, shape index: {}]
  %s3 = inlined_call_operand.hbm [shape: bf16[128,128], index: 3, kind: input, shape index: {}]
  %s4 = inlined_call_operand.vmem [shape: f32[1,128], index: 4, kind: input, shape index: {}]
  %s5 = inlined_call_operand.hbm [shape: f32[128,128], index: 5, kind: output, shape index: {0}]
  %s6 = inlined_call_operand.hbm [shape: f32[1,128], index: 6, kind: output, shape index: {1}]
  %s7 = inlined_call_operand.hbm [shape: f32[1,128], index: 7, kind: output, shape index: {2}]
  %8 = xla_tuple %s5, %s6, %s7
  %s9 = sld [smem:[#allocation0]]
  $region62: #{tpu_custom_call.1} parent=0
    _
  %s11 = ssub.s32 1, %s9
  %s12 = scalar_select 0, %s11, %s9
  $region1: #{tpu_custom_call.1} parent=0
    #allocation2 [shape = 'u8[65536]{0}', space=vmem, size = 0x10000, scoped, tag = 'input window, operand 0, single buffered']
    #allocation3 [shape = 's32[1]{0}', space=sflag, size = 0x4, scoped, tag = 'scoped memory for tpu_custom_call.1']
    #allocation4 [shape = 's32[1]{0}', space=sflag, size = 0x4, scoped, tag = 'scoped memory for tpu_custom_call.1']
    #allocation5 [shape = 'u8[32768]{0}', space=vmem, size = 0x8000, scoped, tag = 'input window, operand 1, single buffered']
    #allocation6 [shape = 's32[1]{0}', space=sflag, size = 0x4, scoped, tag = 'scoped memory for tpu_custom_call.1']
    #allocation7 [shape = 'u8[32768]{0}', space=vmem, size = 0x8000, scoped, tag = 'input window, operand 3, single buffered']
    #allocation8 [shape = 'u8[65536]{0}', space=vmem, size = 0x10000, scoped, tag = 'output window, operand 0, single buffered']
    #allocation9 [shape = 'u8[512]{0}', space=vmem, size = 0x400, scoped, tag = 'output window, operand 1, single buffered']
    #allocation10 [shape = 's32[1]{0}', space=sflag, size = 0x4, scoped, tag = 'scoped memory for tpu_custom_call.1']
    #allocation11 [shape = 'u8[512]{0}', space=vmem, size = 0x400, scoped, tag = 'output window, operand 2, single buffered']
    %13 = vsyncpa [#allocation3], 0
    %14 = vsyncpa [#allocation6], 0
    %15 = vsyncpa [#allocation4], 0
    %16 = vsyncpa [#allocation10], 0
    // Predicated region
    $region2: #{tpu_custom_call.1} parent=1 // pred_check
      _
    $region3: #{tpu_custom_call.1} parent=1 // pred_check_branch
      %18 = sbr.rel (0) target = $region5
    $region4: #{tpu_custom_call.1} parent=1 // pred_region
      %20 = vsyncadd [#allocation3], 0
      %s21 = sshll.u32 %s0, 4
      %s22 = int_to_ptr.hbm [resolvable:$true] %s21
      %s23 = sshll.u32 [#allocation2], 4
      %s24 = int_to_ptr.vmem [resolvable:$true] %s23
      %29 = dma.hbm_to_vmem [thread:$0]  %s22, 2048, %s24, [#allocation3], 128, 128, 8
    $region5: #{tpu_custom_call.1} parent=1 // pred_fallthru
      _
    // Predicated region
    $region6: #{tpu_custom_call.1} parent=1 // pred_check
      _
    $region7: #{tpu_custom_call.1} parent=1 // pred_check_branch
      %31 = sbr.rel (0) target = $region9
    $region8: #{tpu_custom_call.1} parent=1 // pred_region
      %33 = vsyncadd [#allocation6], 0
      %s34 = sshll.u32 %s1, 4
      %s35 = int_to_ptr.hbm [resolvable:$true] %s34
      %s36 = sshll.u32 [#allocation5], 4
      %s37 = int_to_ptr.vmem [resolvable:$true] %s36
      %42 = dma.hbm_to_vmem [thread:$0]  %s35, 1024, %s37, [#allocation6], 64, 64, 4
    $region9: #{tpu_custom_call.1} parent=1 // pred_fallthru
      _
    // Predicated region
    $region10: #{tpu_custom_call.1} parent=1 // pred_check
      _
    $region11: #{tpu_custom_call.1} parent=1 // pred_check_branch
      %44 = sbr.rel (0) target = $region13
    $region12: #{tpu_custom_call.1} parent=1 // pred_region
      _
    $region13: #{tpu_custom_call.1} parent=1 // pred_fallthru
      _
    // Predicated region
    $region14: #{tpu_custom_call.1} parent=1 // pred_check
      _
    $region15: #{tpu_custom_call.1} parent=1 // pred_check_branch
      %46 = sbr.rel (0) target = $region17
    $region16: #{tpu_custom_call.1} parent=1 // pred_region
      %48 = vsyncadd [#allocation6], 0
      %s49 = sshll.u32 %s3, 4
      %s50 = int_to_ptr.hbm [resolvable:$true] %s49
      %s51 = sshll.u32 [#allocation7], 4
      %s52 = int_to_ptr.vmem [resolvable:$true] %s51
      %57 = dma.hbm_to_vmem [thread:$0]  %s50, 1024, %s52, [#allocation6], 64, 64, 4
    $region17: #{tpu_custom_call.1} parent=1 // pred_fallthru
      _
    // Predicated region
    $region18: #{tpu_custom_call.1} parent=1 // pred_check
      _
    $region19: #{tpu_custom_call.1} parent=1 // pred_check_branch
      %59 = sbr.rel (0) target = $region21
    $region20: #{tpu_custom_call.1} parent=1 // pred_region
      _
    $region21: #{tpu_custom_call.1} parent=1 // pred_fallthru
      _
    // Predicated region
    $region22: #{tpu_custom_call.1} parent=1 // pred_check
      _
    $region23: #{tpu_custom_call.1} parent=1 // pred_check_branch
      %61 = sbr.rel (0) target = $region25
    $region24: #{tpu_custom_call.1} parent=1 // pred_region
      %63 = dma.done [#allocation3], 2048
    $region25: #{tpu_custom_call.1} parent=1 // pred_fallthru
      _
    // Predicated region
    $region26: #{tpu_custom_call.1} parent=1 // pred_check
      _
    $region27: #{tpu_custom_call.1} parent=1 // pred_check_branch
      %65 = sbr.rel (0) target = $region29
    $region28: #{tpu_custom_call.1} parent=1 // pred_region
      %67 = dma.done [#allocation6], 1024
    $region29: #{tpu_custom_call.1} parent=1 // pred_fallthru
      _
    // Predicated region
    $region30: #{tpu_custom_call.1} parent=1 // pred_check
      _
    $region31: #{tpu_custom_call.1} parent=1 // pred_check_branch
      %69 = sbr.rel (0) target = $region33
    $region32: #{tpu_custom_call.1} parent=1 // pred_region
      %71 = dma.done [#allocation6], 1024
    $region33: #{tpu_custom_call.1} parent=1 // pred_fallthru
      _
    %p72 = scmp.eq.s32.totalorder 0, 0
    // Predicated region
    $region34: #{tpu_custom_call.1} parent=1 // pred_check
      %p73 = pneg %p72
    $region35: #{tpu_custom_call.1} parent=1 // pred_check_branch
      %75 = sbr.rel (%p73) target = $region37
    $region36: #{tpu_custom_call.1} parent=1 // pred_region
      %76 = vst [vmem:[#allocation9] sm:$0x1] 0.0
      %77 = vst [vmem:[#allocation11] sm:$0x1] 0.0
    $region37: #{tpu_custom_call.1} parent=1 // pred_fallthru
      _
    %v78 = vld [vmem:[#allocation2] sm:$0xff]
    %v79 = vld [vmem:[#allocation2 + $0x8] sm:$0xff]
    %v80 = vld [vmem:[#allocation2 + $0x10] sm:$0xff]
    %v81 = vld [vmem:[#allocation2 + $0x18] sm:$0xff]
    %v82 = vld [vmem:[#allocation2 + $0x20] sm:$0xff]
    %v83 = vld [vmem:[#allocation2 + $0x28] sm:$0xff]
    %v84 = vld [vmem:[#allocation2 + $0x30] sm:$0xff]
    %v85 = vld [vmem:[#allocation2 + $0x38] sm:$0xff]
    %v86 = vld [vmem:[#allocation2 + $0x40] sm:$0xff]
    %v87 = vld [vmem:[#allocation2 + $0x48] sm:$0xff]
    %v88 = vld [vmem:[#allocation2 + $0x50] sm:$0xff]
    %v89 = vld [vmem:[#allocation2 + $0x58] sm:$0xff]
    %v90 = vld [vmem:[#allocation2 + $0x60] sm:$0xff]
    %v91 = vld [vmem:[#allocation2 + $0x68] sm:$0xff]
    %v92 = vld [vmem:[#allocation2 + $0x70] sm:$0xff]
    %v93 = vld [vmem:[#allocation2 + $0x78] sm:$0xff]
    %v94 = vpack.c.bf16 %v79, %v78
    %v95 = vpack.c.bf16 %v81, %v80
    %v96 = vpack.c.bf16 %v83, %v82
    %v97 = vpack.c.bf16 %v85, %v84
    %v98 = vpack.c.bf16 %v87, %v86
    %v99 = vpack.c.bf16 %v89, %v88
    %v100 = vpack.c.bf16 %v91, %v90
    %v101 = vpack.c.bf16 %v93, %v92
    %v102 = vld [vmem:[#allocation5] sm:$0xf]
    %v103 = vld [vmem:[#allocation5 + $0x4] sm:$0xf]
    %v104 = vld [vmem:[#allocation5 + $0x8] sm:$0xf]
    %v105 = vld [vmem:[#allocation5 + $0xc] sm:$0xf]
    %v106 = vld [vmem:[#allocation5 + $0x10] sm:$0xf]
    %v107 = vld [vmem:[#allocation5 + $0x14] sm:$0xf]
    %v108 = vld [vmem:[#allocation5 + $0x18] sm:$0xf]
    %v109 = vld [vmem:[#allocation5 + $0x1c] sm:$0xf]
    %v110 = vld [vmem:[#allocation5 + $0x20] sm:$0xf]
    %v111 = vld [vmem:[#allocation5 + $0x24] sm:$0xf]
    %v112 = vld [vmem:[#allocation5 + $0x28] sm:$0xf]
    %v113 = vld [vmem:[#allocation5 + $0x2c] sm:$0xf]
    %v114 = vld [vmem:[#allocation5 + $0x30] sm:$0xf]
    %v115 = vld [vmem:[#allocation5 + $0x34] sm:$0xf]
    %v116 = vld [vmem:[#allocation5 + $0x38] sm:$0xf]
    %v117 = vld [vmem:[#allocation5 + $0x3c] sm:$0xf]
    %v118 = vld [vmem:[%s2] sm:$0x1]
    %v120 = vperm.slane %v118, 0
    %v138 = vunpack.c.l.b16 %v102
    %v139 = vunpack.c.l.b16 %v103
    %v140 = vunpack.c.l.b16 %v104
    %v141 = vunpack.c.l.b16 %v105
    %v142 = vunpack.c.l.b16 %v106
    %v143 = vunpack.c.l.b16 %v107
    %v144 = vunpack.c.l.b16 %v108
    %v145 = vunpack.c.l.b16 %v109
    %v146 = vunpack.c.l.b16 %v110
    %v147 = vunpack.c.l.b16 %v111
    %v148 = vunpack.c.l.b16 %v112
    %v149 = vunpack.c.l.b16 %v113
    %v150 = vunpack.c.l.b16 %v114
    %v151 = vunpack.c.l.b16 %v115
    %v152 = vunpack.c.l.b16 %v116
    %v153 = vunpack.c.l.b16 %v117
    %v154 = vpack.c.b16 %v139, %v138
    %v155 = vpack.c.b16 %v141, %v140
    %v156 = vpack.c.b16 %v143, %v142
    %v157 = vpack.c.b16 %v145, %v144
    %v158 = vpack.c.b16 %v147, %v146
    %v159 = vpack.c.b16 %v149, %v148
    %v160 = vpack.c.b16 %v151, %v150
    %v161 = vpack.c.b16 %v153, %v152
    %170 = vmatpush.bf16.msra.mxu0 %v161
    %171 = vmatpush.bf16.msra.mxu0 %v160
    %172 = vmatpush.bf16.msra.mxu0 %v159
    %173 = vmatpush.bf16.msra.mxu0 %v158
    %174 = vmatpush.bf16.msra.mxu0 %v157
    %175 = vmatpush.bf16.msra.mxu0 %v156
    %176 = vmatpush.bf16.msra.mxu0 %v155
    %177 = vmatpush.bf16.msra.mxu0 %v154
    %178 = vmatmul.bf16.gmra.mxu0 %v94
    %v179 = vpop.f32.mrf.mxu0
    %v180 = vadd.f32 %v120, %v179
    %v181 = vpop.f32.mrf.mxu0
    %v182 = vadd.f32 %v120, %v181
    %183 = vmatmul.bf16.gmra.mxu0 %v95
    %v184 = vpop.f32.mrf.mxu0
    %v185 = vadd.f32 %v120, %v184
    %v186 = vpop.f32.mrf.mxu0
    %v187 = vadd.f32 %v120, %v186
    %188 = vmatmul.bf16.gmra.mxu0 %v96
    %v189 = vpop.f32.mrf.mxu0
    %v190 = vadd.f32 %v120, %v189
    %v191 = vpop.f32.mrf.mxu0
    %v192 = vadd.f32 %v120, %v191
    %193 = vmatmul.bf16.gmra.mxu0 %v97
    %v194 = vpop.f32.mrf.mxu0
    %v195 = vadd.f32 %v120, %v194
    %v196 = vpop.f32.mrf.mxu0
    %v197 = vadd.f32 %v120, %v196
    %198 = vmatmul.bf16.gmra.mxu0 %v98
    %v199 = vpop.f32.mrf.mxu0
    %v200 = vadd.f32 %v120, %v199
    %v201 = vpop.f32.mrf.mxu0
    %v202 = vadd.f32 %v120, %v201
    %203 = vmatmul.bf16.gmra.mxu0 %v99
    %v204 = vpop.f32.mrf.mxu0
    %v205 = vadd.f32 %v120, %v204
    %v206 = vpop.f32.mrf.mxu0
    %v207 = vadd.f32 %v120, %v206
    %208 = vmatmul.bf16.gmra.mxu0 %v100
    %v209 = vpop.f32.mrf.mxu0
    %v210 = vadd.f32 %v120, %v209
    %v211 = vpop.f32.mrf.mxu0
    %v212 = vadd.f32 %v120, %v211
    %213 = vmatmul.bf16.gmra.mxu0 %v101
    %v214 = vpop.f32.mrf.mxu0
    %v215 = vadd.f32 %v120, %v214
    %v216 = vpop.f32.mrf.mxu0
    %v217 = vadd.f32 %v120, %v216
    %218 = vdwg.mxu0
    %v219 = vmax.f32 %v180, 0.0
    %v220 = vmax.f32 %v182, 0.0
    %v221 = vmax.f32 %v185, 0.0
    %v222 = vmax.f32 %v187, 0.0
    %v223 = vmax.f32 %v190, 0.0
    %v224 = vmax.f32 %v192, 0.0
    %v225 = vmax.f32 %v195, 0.0
    %v226 = vmax.f32 %v197, 0.0
    %v227 = vmax.f32 %v200, 0.0
    %v228 = vmax.f32 %v202, 0.0
    %v229 = vmax.f32 %v205, 0.0
    %v230 = vmax.f32 %v207, 0.0
    %v231 = vmax.f32 %v210, 0.0
    %v232 = vmax.f32 %v212, 0.0
    %v233 = vmax.f32 %v215, 0.0
    %v234 = vmax.f32 %v217, 0.0
    %v235 = vpack.c.bf16 %v220, %v219
    %v236 = vpack.c.bf16 %v222, %v221
    %v237 = vpack.c.bf16 %v224, %v223
    %v238 = vpack.c.bf16 %v226, %v225
    %v239 = vpack.c.bf16 %v228, %v227
    %v240 = vpack.c.bf16 %v230, %v229
    %v241 = vpack.c.bf16 %v232, %v231
    %v242 = vpack.c.bf16 %v234, %v233
    %v243 = vld [vmem:[#allocation7] sm:$0xf]
    %v244 = vld [vmem:[#allocation7 + $0x4] sm:$0xf]
    %v245 = vld [vmem:[#allocation7 + $0x8] sm:$0xf]
    %v246 = vld [vmem:[#allocation7 + $0xc] sm:$0xf]
    %v247 = vld [vmem:[#allocation7 + $0x10] sm:$0xf]
    %v248 = vld [vmem:[#allocation7 + $0x14] sm:$0xf]
    %v249 = vld [vmem:[#allocation7 + $0x18] sm:$0xf]
    %v250 = vld [vmem:[#allocation7 + $0x1c] sm:$0xf]
    %v251 = vld [vmem:[#allocation7 + $0x20] sm:$0xf]
    %v252 = vld [vmem:[#allocation7 + $0x24] sm:$0xf]
    %v253 = vld [vmem:[#allocation7 + $0x28] sm:$0xf]
    %v254 = vld [vmem:[#allocation7 + $0x2c] sm:$0xf]
    %v255 = vld [vmem:[#allocation7 + $0x30] sm:$0xf]
    %v256 = vld [vmem:[#allocation7 + $0x34] sm:$0xf]
    %v257 = vld [vmem:[#allocation7 + $0x38] sm:$0xf]
    %v258 = vld [vmem:[#allocation7 + $0x3c] sm:$0xf]
    %v259 = vld [vmem:[%s4] sm:$0x1]
    %v261 = vperm.slane %v259, 0
    %v279 = vunpack.c.l.b16 %v243
    %v280 = vunpack.c.l.b16 %v244
    %v281 = vunpack.c.l.b16 %v245
    %v282 = vunpack.c.l.b16 %v246
    %v283 = vunpack.c.l.b16 %v247
    %v284 = vunpack.c.l.b16 %v248
    %v285 = vunpack.c.l.b16 %v249
    %v286 = vunpack.c.l.b16 %v250
    %v287 = vunpack.c.l.b16 %v251
    %v288 = vunpack.c.l.b16 %v252
    %v289 = vunpack.c.l.b16 %v253
    %v290 = vunpack.c.l.b16 %v254
    %v291 = vunpack.c.l.b16 %v255
    %v292 = vunpack.c.l.b16 %v256
    %v293 = vunpack.c.l.b16 %v257
    %v294 = vunpack.c.l.b16 %v258
    %v295 = vpack.c.b16 %v280, %v279
    %v296 = vpack.c.b16 %v282, %v281
    %v297 = vpack.c.b16 %v284, %v283
    %v298 = vpack.c.b16 %v286, %v285
    %v299 = vpack.c.b16 %v288, %v287
    %v300 = vpack.c.b16 %v290, %v289
    %v301 = vpack.c.b16 %v292, %v291
    %v302 = vpack.c.b16 %v294, %v293
    %311 = vmatpush.bf16.msra.mxu0 %v302
    %312 = vmatpush.bf16.msra.mxu0 %v301
    %313 = vmatpush.bf16.msra.mxu0 %v300
    %314 = vmatpush.bf16.msra.mxu0 %v299
    %315 = vmatpush.bf16.msra.mxu0 %v298
    %316 = vmatpush.bf16.msra.mxu0 %v297
    %317 = vmatpush.bf16.msra.mxu0 %v296
    %318 = vmatpush.bf16.msra.mxu0 %v295
    %319 = vmatmul.bf16.gmra.mxu0 %v235
    %v320 = vpop.f32.mrf.mxu0
    %v321 = vadd.f32 %v261, %v320
    %v322 = vpop.f32.mrf.mxu0
    %v323 = vadd.f32 %v261, %v322
    %324 = vmatmul.bf16.gmra.mxu0 %v236
    %v325 = vpop.f32.mrf.mxu0
    %v326 = vadd.f32 %v261, %v325
    %v327 = vpop.f32.mrf.mxu0
    %v328 = vadd.f32 %v261, %v327
    %329 = vmatmul.bf16.gmra.mxu0 %v237
    %v330 = vpop.f32.mrf.mxu0
    %v331 = vadd.f32 %v261, %v330
    %v332 = vpop.f32.mrf.mxu0
    %v333 = vadd.f32 %v261, %v332
    %334 = vmatmul.bf16.gmra.mxu0 %v238
    %v335 = vpop.f32.mrf.mxu0
    %v336 = vadd.f32 %v261, %v335
    %v337 = vpop.f32.mrf.mxu0
    %v338 = vadd.f32 %v261, %v337
    %339 = vmatmul.bf16.gmra.mxu0 %v239
    %v340 = vpop.f32.mrf.mxu0
    %v341 = vadd.f32 %v261, %v340
    %v342 = vpop.f32.mrf.mxu0
    %v343 = vadd.f32 %v261, %v342
    %344 = vmatmul.bf16.gmra.mxu0 %v240
    %v345 = vpop.f32.mrf.mxu0
    %v346 = vadd.f32 %v261, %v345
    %v347 = vpop.f32.mrf.mxu0
    %v348 = vadd.f32 %v261, %v347
    %349 = vmatmul.bf16.gmra.mxu0 %v241
    %v350 = vpop.f32.mrf.mxu0
    %v351 = vadd.f32 %v261, %v350
    %v352 = vpop.f32.mrf.mxu0
    %v353 = vadd.f32 %v261, %v352
    %354 = vmatmul.bf16.gmra.mxu0 %v242
    %v355 = vpop.f32.mrf.mxu0
    %v356 = vadd.f32 %v261, %v355
    %v357 = vpop.f32.mrf.mxu0
    %v358 = vadd.f32 %v261, %v357
    %359 = vdwg.mxu0
    %v360 = vmax.f32 %v321, 0.0
    %v361 = vmax.f32 %v323, 0.0
    %v362 = vmax.f32 %v326, 0.0
    %v363 = vmax.f32 %v328, 0.0
    %v364 = vmax.f32 %v331, 0.0
    %v365 = vmax.f32 %v333, 0.0
    %v366 = vmax.f32 %v336, 0.0
    %v367 = vmax.f32 %v338, 0.0
    %v368 = vmax.f32 %v341, 0.0
    %v369 = vmax.f32 %v343, 0.0
    %v370 = vmax.f32 %v346, 0.0
    %v371 = vmax.f32 %v348, 0.0
    %v372 = vmax.f32 %v351, 0.0
    %v373 = vmax.f32 %v353, 0.0
    %v374 = vmax.f32 %v356, 0.0
    %v375 = vmax.f32 %v358, 0.0
    %s376 = smul.u32 0, 128
    %v377 = vlaneseq
    %v378 = vshrl.u32 %v377, 7
    %v379 = vadd.s32 %v378, 8
    %v380 = vadd.s32 %v378, 16
    %v381 = vadd.s32 %v378, 24
    %v382 = vadd.s32 %v378, 32
    %v383 = vadd.s32 %v378, 40
    %v384 = vadd.s32 %v378, 48
    %v385 = vadd.s32 %v378, 56
    %v386 = vadd.s32 %v378, 64
    %v387 = vadd.s32 %v378, 72
    %v388 = vadd.s32 %v378, 80
    %v389 = vadd.s32 %v378, 88
    %v390 = vadd.s32 %v378, 96
    %v391 = vadd.s32 %v378, 104
    %v392 = vadd.s32 %v378, 112
    %v393 = vadd.s32 %v378, 120
    %v394 = vstv %s376
    %v395 = vadd.s32 %v394, %v378
    %v396 = vadd.s32 %v394, %v379
    %v397 = vadd.s32 %v394, %v380
    %v398 = vadd.s32 %v394, %v381
    %v399 = vadd.s32 %v394, %v382
    %v400 = vadd.s32 %v394, %v383
    %v401 = vadd.s32 %v394, %v384
    %v402 = vadd.s32 %v394, %v385
    %v403 = vadd.s32 %v394, %v386
    %v404 = vadd.s32 %v394, %v387
    %v405 = vadd.s32 %v394, %v388
    %v406 = vadd.s32 %v394, %v389
    %v407 = vadd.s32 %v394, %v390
    %v408 = vadd.s32 %v394, %v391
    %v409 = vadd.s32 %v394, %v392
    %v410 = vadd.s32 %v394, %v393
    %vm411 = vcmp.lt.s32.totalorder %v395, 16
    %vm412 = vcmp.lt.s32.totalorder %v396, 16
    %vm413 = vcmp.lt.s32.totalorder %v397, 16
    %vm414 = vcmp.lt.s32.totalorder %v398, 16
    %vm415 = vcmp.lt.s32.totalorder %v399, 16
    %vm416 = vcmp.lt.s32.totalorder %v400, 16
    %vm417 = vcmp.lt.s32.totalorder %v401, 16
    %vm418 = vcmp.lt.s32.totalorder %v402, 16
    %vm419 = vcmp.lt.s32.totalorder %v403, 16
    %vm420 = vcmp.lt.s32.totalorder %v404, 16
    %vm421 = vcmp.lt.s32.totalorder %v405, 16
    %vm422 = vcmp.lt.s32.totalorder %v406, 16
    %vm423 = vcmp.lt.s32.totalorder %v407, 16
    %vm424 = vcmp.lt.s32.totalorder %v408, 16
    %vm425 = vcmp.lt.s32.totalorder %v409, 16
    %vm426 = vcmp.lt.s32.totalorder %v410, 16
    %v427 = vsel %vm411, 1, 0
    %v428 = vsel %vm412, 1, 0
    %v429 = vsel %vm413, 1, 0
    %v430 = vsel %vm414, 1, 0
    %v431 = vsel %vm415, 1, 0
    %v432 = vsel %vm416, 1, 0
    %v433 = vsel %vm417, 1, 0
    %v434 = vsel %vm418, 1, 0
    %v435 = vsel %vm419, 1, 0
    %v436 = vsel %vm420, 1, 0
    %v437 = vsel %vm421, 1, 0
    %v438 = vsel %vm422, 1, 0
    %v439 = vsel %vm423, 1, 0
    %v440 = vsel %vm424, 1, 0
    %v441 = vsel %vm425, 1, 0
    %v442 = vsel %vm426, 1, 0
    %v443 = vcvt.s32.f32 %v427
    %v444 = vcvt.s32.f32 %v428
    %v445 = vcvt.s32.f32 %v429
    %v446 = vcvt.s32.f32 %v430
    %v447 = vcvt.s32.f32 %v431
    %v448 = vcvt.s32.f32 %v432
    %v449 = vcvt.s32.f32 %v433
    %v450 = vcvt.s32.f32 %v434
    %v451 = vcvt.s32.f32 %v435
    %v452 = vcvt.s32.f32 %v436
    %v453 = vcvt.s32.f32 %v437
    %v454 = vcvt.s32.f32 %v438
    %v455 = vcvt.s32.f32 %v439
    %v456 = vcvt.s32.f32 %v440
    %v457 = vcvt.s32.f32 %v441
    %v458 = vcvt.s32.f32 %v442
    %v459 = vmul.f32 %v360, %v443
    %v460 = vmul.f32 %v361, %v444
    %v461 = vmul.f32 %v362, %v445
    %v462 = vmul.f32 %v363, %v446
    %v463 = vmul.f32 %v364, %v447
    %v464 = vmul.f32 %v365, %v448
    %v465 = vmul.f32 %v366, %v449
    %v466 = vmul.f32 %v367, %v450
    %v467 = vmul.f32 %v368, %v451
    %v468 = vmul.f32 %v369, %v452
    %v469 = vmul.f32 %v370, %v453
    %v470 = vmul.f32 %v371, %v454
    %v471 = vmul.f32 %v372, %v455
    %v472 = vmul.f32 %v373, %v456
    %v473 = vmul.f32 %v374, %v457
    %v474 = vmul.f32 %v375, %v458
    %475 = vst [vmem:[#allocation8] sm:$0xff] %v459
    %476 = vst [vmem:[#allocation8 + $0x8] sm:$0xff] %v460
    %477 = vst [vmem:[#allocation8 + $0x10] sm:$0xff] %v461
    %478 = vst [vmem:[#allocation8 + $0x18] sm:$0xff] %v462
    %479 = vst [vmem:[#allocation8 + $0x20] sm:$0xff] %v463
    %480 = vst [vmem:[#allocation8 + $0x28] sm:$0xff] %v464
    %481 = vst [vmem:[#allocation8 + $0x30] sm:$0xff] %v465
    %482 = vst [vmem:[#allocation8 + $0x38] sm:$0xff] %v466
    %483 = vst [vmem:[#allocation8 + $0x40] sm:$0xff] %v467
    %484 = vst [vmem:[#allocation8 + $0x48] sm:$0xff] %v468
    %485 = vst [vmem:[#allocation8 + $0x50] sm:$0xff] %v469
    %486 = vst [vmem:[#allocation8 + $0x58] sm:$0xff] %v470
    %487 = vst [vmem:[#allocation8 + $0x60] sm:$0xff] %v471
    %488 = vst [vmem:[#allocation8 + $0x68] sm:$0xff] %v472
    %489 = vst [vmem:[#allocation8 + $0x70] sm:$0xff] %v473
    %490 = vst [vmem:[#allocation8 + $0x78] sm:$0xff] %v474
    %v491 = vld [vmem:[#allocation9] sm:$0x1]
    %v492 = vadd.f32 %v459, %v460
    %v493 = vadd.f32 %v492, %v461
    %v494 = vadd.f32 %v493, %v462
    %v495 = vadd.f32 %v494, %v463
    %v496 = vadd.f32 %v495, %v464
    %v497 = vadd.f32 %v496, %v465
    %v498 = vadd.f32 %v497, %v466
    %v499 = vadd.f32 %v498, %v467
    %v500 = vadd.f32 %v499, %v468
    %v501 = vadd.f32 %v500, %v469
    %v502 = vadd.f32 %v501, %v470
    %v503 = vadd.f32 %v502, %v471
    %v504 = vadd.f32 %v503, %v472
    %v505 = vadd.f32 %v504, %v473
    %v506 = vadd.f32 %v505, %v474
    %v507 = vrot.slane %v506, 4
    %v508 = vadd.f32 %v506, %v507
    %v509 = vrot.slane %v508, 2
    %v510 = vadd.f32 %v508, %v509
    %v511 = vrot.slane %v510, 1
    %v512 = vadd.f32 %v510, %v511
    %v513 = vadd.f32 %v491, %v512
    %514 = vst [vmem:[#allocation9] sm:$0x1] %v513
    %v515 = vld [vmem:[#allocation11] sm:$0x1]
    %v516 = vmul.f32 %v459, %v459
    %v517 = vmul.f32 %v460, %v460
    %v518 = vmul.f32 %v461, %v461
    %v519 = vmul.f32 %v462, %v462
    %v520 = vmul.f32 %v463, %v463
    %v521 = vmul.f32 %v464, %v464
    %v522 = vmul.f32 %v465, %v465
    %v523 = vmul.f32 %v466, %v466
    %v524 = vmul.f32 %v467, %v467
    %v525 = vmul.f32 %v468, %v468
    %v526 = vmul.f32 %v469, %v469
    %v527 = vmul.f32 %v470, %v470
    %v528 = vmul.f32 %v471, %v471
    %v529 = vmul.f32 %v472, %v472
    %v530 = vmul.f32 %v473, %v473
    %v531 = vmul.f32 %v474, %v474
    %v532 = vadd.f32 %v516, %v517
    %v533 = vadd.f32 %v532, %v518
    %v534 = vadd.f32 %v533, %v519
    %v535 = vadd.f32 %v534, %v520
    %v536 = vadd.f32 %v535, %v521
    %v537 = vadd.f32 %v536, %v522
    %v538 = vadd.f32 %v537, %v523
    %v539 = vadd.f32 %v538, %v524
    %v540 = vadd.f32 %v539, %v525
    %v541 = vadd.f32 %v540, %v526
    %v542 = vadd.f32 %v541, %v527
    %v543 = vadd.f32 %v542, %v528
    %v544 = vadd.f32 %v543, %v529
    %v545 = vadd.f32 %v544, %v530
    %v546 = vadd.f32 %v545, %v531
    %v547 = vrot.slane %v546, 4
    %v548 = vadd.f32 %v546, %v547
    %v549 = vrot.slane %v548, 2
    %v550 = vadd.f32 %v548, %v549
    %v551 = vrot.slane %v550, 1
    %v552 = vadd.f32 %v550, %v551
    %v553 = vadd.f32 %v515, %v552
    %554 = vst [vmem:[#allocation11] sm:$0x1] %v553
    // Predicated region
    $region38: #{tpu_custom_call.1} parent=1 // pred_check
      _
    $region39: #{tpu_custom_call.1} parent=1 // pred_check_branch
      %556 = sbr.rel (0) target = $region41
    $region40: #{tpu_custom_call.1} parent=1 // pred_region
      %558 = vsyncadd [#allocation4], 0
      %s559 = sshll.u32 [#allocation8], 4
      %s560 = int_to_ptr.vmem [resolvable:$true] %s559
      %s561 = sshll.u32 %s5, 4
      %s562 = int_to_ptr.hbm [resolvable:$true] %s561
      %567 = dma.vmem_to_hbm [thread:$0]  %s560, 2048, %s562, [#allocation4], 128, 128, 8
    $region41: #{tpu_custom_call.1} parent=1 // pred_fallthru
      _
    // Predicated region
    $region42: #{tpu_custom_call.1} parent=1 // pred_check
      _
    $region43: #{tpu_custom_call.1} parent=1 // pred_check_branch
      %569 = sbr.rel (0) target = $region45
    $region44: #{tpu_custom_call.1} parent=1 // pred_region
      %571 = vsyncadd [#allocation10], 0
      %s573 = sshll.u32 [#allocation9], 4
      %s574 = int_to_ptr.vmem [resolvable:$true] %s573
      %s575 = sshll.u32 %s6, 4
      %s576 = int_to_ptr.hbm [resolvable:$true] %s575
      %578 = dma.vmem_to_hbm [thread:$0]  %s574, 16, %s576, [#allocation10]
    $region45: #{tpu_custom_call.1} parent=1 // pred_fallthru
      _
    // Predicated region
    $region46: #{tpu_custom_call.1} parent=1 // pred_check
      _
    $region47: #{tpu_custom_call.1} parent=1 // pred_check_branch
      %580 = sbr.rel (0) target = $region49
    $region48: #{tpu_custom_call.1} parent=1 // pred_region
      %582 = vsyncadd [#allocation10], 0
      %s584 = sshll.u32 [#allocation11], 4
      %s585 = int_to_ptr.vmem [resolvable:$true] %s584
      %s586 = sshll.u32 %s7, 4
      %s587 = int_to_ptr.hbm [resolvable:$true] %s586
      %589 = dma.vmem_to_hbm [thread:$0]  %s585, 16, %s587, [#allocation10]
    $region49: #{tpu_custom_call.1} parent=1 // pred_fallthru
      _
    // Predicated region
    $region50: #{tpu_custom_call.1} parent=1 // pred_check
      _
    $region51: #{tpu_custom_call.1} parent=1 // pred_check_branch
      %591 = sbr.rel (0) target = $region53
    $region52: #{tpu_custom_call.1} parent=1 // pred_region
      %593 = dma.done [#allocation4], 2048
    $region53: #{tpu_custom_call.1} parent=1 // pred_fallthru
      _
    // Predicated region
    $region54: #{tpu_custom_call.1} parent=1 // pred_check
      _
    $region55: #{tpu_custom_call.1} parent=1 // pred_check_branch
      %595 = sbr.rel (0) target = $region57
    $region56: #{tpu_custom_call.1} parent=1 // pred_region
      %597 = dma.done [#allocation10], 16
    $region57: #{tpu_custom_call.1} parent=1 // pred_fallthru
      _
    // Predicated region
    $region58: #{tpu_custom_call.1} parent=1 // pred_check
      _
    $region59: #{tpu_custom_call.1} parent=1 // pred_check_branch
      %599 = sbr.rel (0) target = $region61
    $region60: #{tpu_custom_call.1} parent=1 // pred_region
      %601 = dma.done [#allocation10], 16
    $region61: #{tpu_custom_call.1} parent=1 // pred_fallthru
      _
    %602 = vsyncpa [#allocation3], 1
    %603 = vsyncpa [#allocation6], 1
    %604 = vsyncpa [#allocation4], 1
    %605 = vsyncpa [#allocation10], 1

</llo_original>
